<compile_context>
chip_gen: v6e
topology: v6e:2x2x1
jax: 0.10.0
libtpu: 0.0.40
codegen_flags: <defaults>
</compile_context>

<pallas_src>
import functools

import jax
import jax.numpy as jnp
import numpy as np
from jax.experimental import pallas as pl
from jax.experimental.pallas import tpu as pltpu


def _round_up(x, m):
    return (x + m - 1) // m * m


def _resident_spec(shape, index_map):
    """BlockSpec for a block whose index is constant across the grid.

    Single-buffered: it is DMA'd once and revisited, so double-buffering would
    only waste VMEM.
    """
    try:
        return pl.BlockSpec(shape, index_map, pipeline_mode=pl.Buffered(1))
    except TypeError:  # older jax without pipeline_mode kwarg
        return pl.BlockSpec(shape, index_map)


# ---------------------------------------------------------------------------
# Kernel helpers
# ---------------------------------------------------------------------------
def _norm_act(y, d_true, norm, activ, eps):
    """InstanceNorm (per-row over features) + ReLU on an f32 tile.

    Padded columns of `y` are exactly 0 (zero-padded weight columns and bias
    entries), so single-pass full-width sums already equal the true-column
    statistics -- no masking needed. After normalization the padded columns
    become (-mean)*rsqrt(var+eps) != 0, but they only ever multiply zero-padded
    weight ROWS of the next layer, so downstream results are unaffected.
    """
    if norm == "in":
        inv_d = 1.0 / d_true
        mean = jnp.sum(y, axis=-1, keepdims=True) * inv_d
        m2 = jnp.sum(y * y, axis=-1, keepdims=True) * inv_d
        var = m2 - mean * mean            # biased variance over true columns
        y = (y - mean) * jax.lax.rsqrt(var + eps)
    if activ == "relu":
        y = jnp.maximum(y, 0.0)
    return y


# refs = (x_ref, w0_ref, b0_ref, w1_ref, b1_ref, ..., o_ref[, acc_ref])
def _mlp_kernel(*refs, n_layers, true_dims, norm, activ, eps, compute_dtype,
                k_tiled):
    x_ref = refs[0]
    o_ref = refs[1 + 2 * n_layers]

    def run_tail(y0):
        # y0: f32 output of layer 0 (bias already added). Applies norm/act for
        # layer 0, then runs the remaining layers and writes o_ref.
        y = y0
        h = None
        for l in range(n_layers):
            if l > 0:
                w_ref = refs[1 + 2 * l]   # (Din_pad, Dout_pad), compute_dtype
                b_ref = refs[2 + 2 * l]   # (1, Dout_pad), f32
                y = jnp.dot(h, w_ref[...], preferred_element_type=jnp.float32)
                y = y + b_ref[...]
            if l == n_layers - 1:
                # Final block: plain Linear. Padded output columns are exactly
                # 0; the wrapper slices them off.
                o_ref[...] = y.astype(o_ref.dtype)
            else:
                y = _norm_act(y, true_dims[l + 1], norm, activ, eps)
                h = y.astype(compute_dtype)

    w0_ref = refs[1]
    b0_ref = refs[2]

    if k_tiled:
        # First layer is K-streamed: accumulate partial matmuls into f32
        # scratch, finalize (bias + norm/act + remaining layers) on last step.
        acc_ref = refs[2 + 2 * n_layers]
        k = pl.program_id(1)

        @pl.when(k == 0)
        def _():
            acc_ref[...] = jnp.zeros_like(acc_ref)

        acc_ref[...] += jnp.dot(x_ref[...], w0_ref[...],
                                preferred_element_type=jnp.float32)

        @pl.when(k == pl.num_programs(1) - 1)
        def _():
            run_tail(acc_ref[...] + b0_ref[...])
    else:
        y0 = jnp.dot(x_ref[...], w0_ref[...],
                     preferred_element_type=jnp.float32)
        run_tail(y0 + b0_ref[...])


# ---------------------------------------------------------------------------
# Wrapper: padding, tiling heuristics, BlockSpecs, grid, VMEM budget.
# ---------------------------------------------------------------------------
def mlp_forward(
    params,
    x_nchw,
    *,
    norm="in",
    activ="relu",
    eps=1e-5,
    compute_dtype=jnp.bfloat16,
    out_dtype=jnp.bfloat16,
):
    """params: list of (w (Din, Dout) f32, b (Dout,) f32). x_nchw: (N, C, ...)."""
    n_layers = len(params)
    B = x_nchw.shape[0]
    x = x_nchw.reshape(B, -1)                      # x.view(x.size(0), -1)

    dims = [x.shape[1]] + [w.shape[1] for (w, _) in params]
    feat_pad = [_round_up(d, 128) for d in dims]   # lane-dense feature dims

    cd_bytes = jnp.dtype(compute_dtype).itemsize
    out_bytes = jnp.dtype(out_dtype).itemsize
    sub = 8 if min(cd_bytes, out_bytes) >= 4 else (
        16 if min(cd_bytes, out_bytes) == 2 else 32)   # sublane granule

    # Per-generation VMEM budget (~75% of physical, leaving headroom for the
    # pipeline's stream buffers and compiler-internal scratch).
    try:
        vmem_cap = int(pltpu.get_tpu_info().vmem_capacity_bytes)
    except Exception:
        vmem_cap = 64 << 20            # assume most restrictive (v7x)
    budget = (vmem_cap * 3) // 4

    def estimate(tm_, k_tiled_, tk_):
        # Resident weights: single-buffered (constant block index).
        res = 0
        for l in range(n_layers):
            if k_tiled_ and l == 0:
                continue
            res += feat_pad[l] * feat_pad[l + 1] * cd_bytes
        res += sum(8 * feat_pad[l + 1] * 4 for l in range(n_layers))  # biases
        # Streamed tiles: double-buffered by the pipeline.
        if k_tiled_:
            stream = tm_ * tk_ * cd_bytes + tk_ * feat_pad[1] * cd_bytes
        else:
            stream = tm_ * feat_pad[0] * cd_bytes
        stream += tm_ * feat_pad[-1] * out_bytes
        stream *= 2
        # f32 intermediates (+ accumulator scratch when K-tiled).
        inter = tm_ * max(feat_pad[1:]) * 4 * 4
        if k_tiled_:
            inter += tm_ * feat_pad[1] * 4
        return res + stream + inter

    # Batch tile: >= 2 grid steps when B allows (so v7x's 2 TCs both get work),
    # up to 512 rows per step on big batches (v5e/v6e sweet spot), shrunk below
    # if VMEM-bound.
    if B >= 2 * sub:
        tm = _round_up((B + 1) // 2, sub)
    else:
        tm = _round_up(max(B, 1), sub)
    tm = max(sub, min(512, tm))

    k_tiled = False
    tk = feat_pad[0]
    while estimate(tm, False, tk) > budget and tm > 64:
        tm = max(64, _round_up(tm // 2, sub))
    if estimate(tm, False, tk) > budget:
        # Resident weights alone blow the budget (large input_dim, e.g. on
        # v7x's 64 MiB VMEM): stream the first-layer weight K-block-wise.
        k_tiled = True
        tk = min(feat_pad[0], 2048)
        while estimate(tm, True, tk) > budget and tk > 128:
            tk = max(128, _round_up(tk // 2, 128))
        while estimate(tm, True, tk) > budget and tm > sub:
            tm = max(sub, _round_up(tm // 2, sub))

    d0_pad = _round_up(dims[0], tk) if k_tiled else feat_pad[0]
    dims_pad = [d0_pad] + feat_pad[1:]
    B_pad = _round_up(B, tm)
    nk = d0_pad // tk if k_tiled else 1

    # Zero-pad input to (B_pad, D0_pad) and cast to the MXU operand dtype.
    x_p = jnp.zeros((B_pad, d0_pad), compute_dtype)
    x_p = x_p.at[:B, : dims[0]].set(x.astype(compute_dtype))

    flat_args = [x_p]
    if k_tiled:
        in_specs = [pl.BlockSpec((tm, tk), lambda i, k: (i, k))]
    else:
        in_specs = [pl.BlockSpec((tm, d0_pad), lambda i: (i, 0))]

    for l, (w, b) in enumerate(params):
        din_p, dout_p = dims_pad[l], dims_pad[l + 1]
        w_p = jnp.zeros((din_p, dout_p), compute_dtype)
        w_p = w_p.at[: dims[l], : dims[l + 1]].set(w.astype(compute_dtype))
        b_p = jnp.zeros((1, dout_p), jnp.float32)
        b_p = b_p.at[0, : dims[l + 1]].set(b.astype(jnp.float32))
        flat_args += [w_p, b_p]
        if k_tiled:
            if l == 0:
                # Streamed K-block of the first weight (double-buffered).
                in_specs.append(pl.BlockSpec((tk, dout_p), lambda i, k: (k, 0)))
            else:
                in_specs.append(_resident_spec((din_p, dout_p),
                                               lambda i, k: (0, 0)))
            in_specs.append(_resident_spec((1, dout_p), lambda i, k: (0, 0)))
        else:
            in_specs.append(_resident_spec((din_p, dout_p), lambda i: (0, 0)))
            in_specs.append(_resident_spec((1, dout_p), lambda i: (0, 0)))

    if k_tiled:
        out_specs = pl.BlockSpec((tm, dims_pad[-1]), lambda i, k: (i, 0))
        grid = (B_pad // tm, nk)
        semantics = ("parallel", "arbitrary")
        scratch = [pltpu.VMEM((tm, dims_pad[1]), jnp.float32)]
    else:
        out_specs = pl.BlockSpec((tm, dims_pad[-1]), lambda i: (i, 0))
        grid = (B_pad // tm,)
        semantics = ("parallel",)
        scratch = []

    est = estimate(tm, k_tiled, tk)
    vmem_limit = int(min(budget, max(est + (8 << 20), 32 << 20)))

    kernel = functools.partial(
        _mlp_kernel,
        n_layers=n_layers,
        true_dims=tuple(dims),
        norm=norm,
        activ=activ,
        eps=eps,
        compute_dtype=compute_dtype,
        k_tiled=k_tiled,
    )

    out_p = pl.pallas_call(
        kernel,
        out_shape=jax.ShapeDtypeStruct((B_pad, dims_pad[-1]), out_dtype),
        grid=grid,
        in_specs=in_specs,
        out_specs=out_specs,
        scratch_shapes=scratch,
        compiler_params=pltpu.CompilerParams(
            dimension_semantics=semantics,
            vmem_limit_bytes=vmem_limit,
        ),
    )(*flat_args)

    return out_p[:B, : dims[-1]]


# ---------------------------------------------------------------------------
# Parameter init (nn.Linear-style uniform bound), weights stored as W^T.
# ---------------------------------------------------------------------------
def init_mlp_params(key, input_dim, output_dim, dim, n_blk):
    dims = [input_dim] + [dim] * (n_blk - 1) + [output_dim]
    params = []
    for i in range(n_blk):
        key, kw, kb = jax.random.split(key, 3)
        din, dout = dims[i], dims[i + 1]
        bound = 1.0 / np.sqrt(din)
        w = jax.random.uniform(kw, (din, dout), jnp.float32, -bound, bound)
        b = jax.random.uniform(kb, (dout,), jnp.float32, -bound, bound)
        params.append((w, b))
    return params


# ---------------------------------------------------------------------------
# Pure-JAX references.
#   compute_dtype=None      -> exact f32 module semantics
#   compute_dtype=bfloat16  -> same bf16-operand / f32-accumulate math as kernel
# ---------------------------------------------------------------------------
def mlp_reference(params, x_nchw, *, norm="in", activ="relu", eps=1e-5,
                  compute_dtype=None):
    B = x_nchw.shape[0]
    h = x_nchw.reshape(B, -1).astype(jnp.float32)
    n = len(params)
    for i, (w, b) in enumerate(params):
        if compute_dtype is not None:
            y = jnp.dot(
                h.astype(compute_dtype),
                w.astype(compute_dtype),
                preferred_element_type=jnp.float32,
            )
        else:
            y = jnp.dot(
                h, w,
                preferred_element_type=jnp.float32,
                precision=jax.lax.Precision.HIGHEST,
            )
        y = y + b[None, :].astype(jnp.float32)
        if i < n - 1:
            if norm == "in":
                mean = jnp.mean(y, axis=-1, keepdims=True)
                var = jnp.mean((y - mean) ** 2, axis=-1, keepdims=True)
                y = (y - mean) * jax.lax.rsqrt(var + eps)
            if activ == "relu":
                y = jnp.maximum(y, 0.0)
        h = y
    return h


if __name__ == "__main__":
    # Small shapes: batch=2, channels=4, spatial=8 -> input_dim = 4*8*8 = 256
    # NOTE: dim=32 / output_dim=8 are padded to 128 lanes inside the kernel.
    B, C, H, W = 2, 4, 8, 8
    input_dim = C * H * W
    dim = 32
    output_dim = 8
    n_blk = 3

    key = jax.random.PRNGKey(0)
    kx, kp = jax.random.split(key)
    x = jax.random.normal(kx, (B, C, H, W), jnp.float32)
    params = init_mlp_params(kp, input_dim, output_dim, dim, n_blk)

    out = mlp_forward(params, x, norm="in", activ="relu")
    out = jax.block_until_ready(out)
    out_f32 = np.asarray(out.astype(jnp.float32))

    # Check against a reference that uses the same bf16-operand / f32-accumulate
    # matmul math (tolerance dominated by the bf16 output rounding) ...
    ref_bf16 = np.asarray(mlp_reference(params, x, compute_dtype=jnp.bfloat16))
    np.testing.assert_allclose(out_f32, ref_bf16, rtol=1e-2, atol=1e-2)

    # ... and against the exact f32 module semantics (bf16-operand tolerance).
    ref_f32 = np.asarray(mlp_reference(params, x))
    np.testing.assert_allclose(out_f32, ref_f32, rtol=6e-2, atol=6e-2)

    print("KERNEL_OK")
</pallas_src>

<mosaic_0001>
module attributes {stable_mosaic.version = 11 : i64} {
  func.func @_mlp_kernel(%arg0: i32, %arg1: memref<16x256xbf16, #tpu.memory_space<vmem>>, %arg2: memref<256x128xbf16, #tpu.memory_space<vmem>>, %arg3: memref<1x128xf32, #tpu.memory_space<vmem>>, %arg4: memref<128x128xbf16, #tpu.memory_space<vmem>>, %arg5: memref<1x128xf32, #tpu.memory_space<vmem>>, %arg6: memref<128x128xbf16, #tpu.memory_space<vmem>>, %arg7: memref<1x128xf32, #tpu.memory_space<vmem>>, %arg8: memref<16x128xbf16, #tpu.memory_space<vmem>>) attributes {dimension_semantics = [#tpu.dimension_semantics<parallel>], iteration_bounds = array<i64: 1>, scalar_prefetch = 0 : i64, scratch_operands = 0 : i64, tpu.core_type = #tpu.core_type<tc>, window_params = [{transform_indices = @transform_0, window_bounds = array<i64: 16, 256>}, {pipeline_mode = #tpu.pipeline_mode<synchronous>, transform_indices = @transform_1, window_bounds = array<i64: 256, 128>}, {pipeline_mode = #tpu.pipeline_mode<synchronous>, transform_indices = @transform_2, window_bounds = array<i64: 1, 128>}, {pipeline_mode = #tpu.pipeline_mode<synchronous>, transform_indices = @transform_3, window_bounds = array<i64: 128, 128>}, {pipeline_mode = #tpu.pipeline_mode<synchronous>, transform_indices = @transform_4, window_bounds = array<i64: 1, 128>}, {pipeline_mode = #tpu.pipeline_mode<synchronous>, transform_indices = @transform_5, window_bounds = array<i64: 128, 128>}, {pipeline_mode = #tpu.pipeline_mode<synchronous>, transform_indices = @transform_6, window_bounds = array<i64: 1, 128>}, {transform_indices = @transform_7, window_bounds = array<i64: 16, 128>}]} {
    %c0 = arith.constant 0 : index
    %c0_0 = arith.constant 0 : index
    %0 = vector.load %arg1[%c0, %c0_0] : memref<16x256xbf16, #tpu.memory_space<vmem>>, vector<16x256xbf16>
    %c0_1 = arith.constant 0 : index
    %c0_2 = arith.constant 0 : index
    %1 = vector.load %arg2[%c0_1, %c0_2] : memref<256x128xbf16, #tpu.memory_space<vmem>>, vector<256x128xbf16>
    %cst = arith.constant dense<0.000000e+00> : vector<16x128xf32>
    %2 = tpu.matmul %0, %1, %cst {dimension_numbers = #tpu.dot_dimension_numbers<[1], [0], [0], [1], [0, 0, 1, 1], [], []>} : vector<16x256xbf16>, vector<256x128xbf16>, vector<16x128xf32> -> vector<16x128xf32>
    %c0_3 = arith.constant 0 : index
    %c0_4 = arith.constant 0 : index
    %3 = vector.load %arg3[%c0_3, %c0_4] : memref<1x128xf32, #tpu.memory_space<vmem>>, vector<1x128xf32>
    %4 = vector.broadcast %3 : vector<1x128xf32> to vector<16x128xf32>
    %5 = arith.addf %2, %4 : vector<16x128xf32>
    %cst_5 = arith.constant dense<0.000000e+00> : vector<16xf32>
    %6 = vector.multi_reduction <add>, %5, %cst_5 [1] : vector<16x128xf32> to vector<16xf32>
    %7 = vector.shape_cast %6 : vector<16xf32> to vector<16x1xf32>
    %cst_6 = arith.constant 3.125000e-02 : f32
    %8 = vector.broadcast %cst_6 : f32 to vector<16x1xf32>
    %9 = arith.mulf %7, %8 : vector<16x1xf32>
    %10 = arith.mulf %5, %5 : vector<16x128xf32>
    %cst_7 = arith.constant dense<0.000000e+00> : vector<16xf32>
    %11 = vector.multi_reduction <add>, %10, %cst_7 [1] : vector<16x128xf32> to vector<16xf32>
    %12 = vector.shape_cast %11 : vector<16xf32> to vector<16x1xf32>
    %cst_8 = arith.constant 3.125000e-02 : f32
    %13 = vector.broadcast %cst_8 : f32 to vector<16x1xf32>
    %14 = arith.mulf %12, %13 : vector<16x1xf32>
    %15 = arith.mulf %9, %9 : vector<16x1xf32>
    %16 = arith.subf %14, %15 : vector<16x1xf32>
    %17 = vector.broadcast %9 : vector<16x1xf32> to vector<16x128xf32>
    %18 = arith.subf %5, %17 : vector<16x128xf32>
    %cst_9 = arith.constant 9.99999974E-6 : f32
    %19 = vector.broadcast %cst_9 : f32 to vector<16x1xf32>
    %20 = arith.addf %16, %19 : vector<16x1xf32>
    %21 = math.rsqrt %20 : vector<16x1xf32>
    %22 = vector.broadcast %21 : vector<16x1xf32> to vector<16x128xf32>
    %23 = arith.mulf %18, %22 : vector<16x128xf32>
    %cst_10 = arith.constant 0.000000e+00 : f32
    %24 = vector.broadcast %cst_10 : f32 to vector<16x128xf32>
    %25 = arith.maximumf %23, %24 : vector<16x128xf32>
    %26 = arith.truncf %25 : vector<16x128xf32> to vector<16x128xbf16>
    %c0_11 = arith.constant 0 : index
    %c0_12 = arith.constant 0 : index
    %27 = vector.load %arg4[%c0_11, %c0_12] : memref<128x128xbf16, #tpu.memory_space<vmem>>, vector<128x128xbf16>
    %cst_13 = arith.constant dense<0.000000e+00> : vector<16x128xf32>
    %28 = tpu.matmul %26, %27, %cst_13 {dimension_numbers = #tpu.dot_dimension_numbers<[1], [0], [0], [1], [0, 0, 1, 1], [], []>} : vector<16x128xbf16>, vector<128x128xbf16>, vector<16x128xf32> -> vector<16x128xf32>
    %c0_14 = arith.constant 0 : index
    %c0_15 = arith.constant 0 : index
    %29 = vector.load %arg5[%c0_14, %c0_15] : memref<1x128xf32, #tpu.memory_space<vmem>>, vector<1x128xf32>
    %30 = vector.broadcast %29 : vector<1x128xf32> to vector<16x128xf32>
    %31 = arith.addf %28, %30 : vector<16x128xf32>
    %cst_16 = arith.constant dense<0.000000e+00> : vector<16xf32>
    %32 = vector.multi_reduction <add>, %31, %cst_16 [1] : vector<16x128xf32> to vector<16xf32>
    %33 = vector.shape_cast %32 : vector<16xf32> to vector<16x1xf32>
    %cst_17 = arith.constant 3.125000e-02 : f32
    %34 = vector.broadcast %cst_17 : f32 to vector<16x1xf32>
    %35 = arith.mulf %33, %34 : vector<16x1xf32>
    %36 = arith.mulf %31, %31 : vector<16x128xf32>
    %cst_18 = arith.constant dense<0.000000e+00> : vector<16xf32>
    %37 = vector.multi_reduction <add>, %36, %cst_18 [1] : vector<16x128xf32> to vector<16xf32>
    %38 = vector.shape_cast %37 : vector<16xf32> to vector<16x1xf32>
    %cst_19 = arith.constant 3.125000e-02 : f32
    %39 = vector.broadcast %cst_19 : f32 to vector<16x1xf32>
    %40 = arith.mulf %38, %39 : vector<16x1xf32>
    %41 = arith.mulf %35, %35 : vector<16x1xf32>
    %42 = arith.subf %40, %41 : vector<16x1xf32>
    %43 = vector.broadcast %35 : vector<16x1xf32> to vector<16x128xf32>
    %44 = arith.subf %31, %43 : vector<16x128xf32>
    %cst_20 = arith.constant 9.99999974E-6 : f32
    %45 = vector.broadcast %cst_20 : f32 to vector<16x1xf32>
    %46 = arith.addf %42, %45 : vector<16x1xf32>
    %47 = math.rsqrt %46 : vector<16x1xf32>
    %48 = vector.broadcast %47 : vector<16x1xf32> to vector<16x128xf32>
    %49 = arith.mulf %44, %48 : vector<16x128xf32>
    %cst_21 = arith.constant 0.000000e+00 : f32
    %50 = vector.broadcast %cst_21 : f32 to vector<16x128xf32>
    %51 = arith.maximumf %49, %50 : vector<16x128xf32>
    %52 = arith.truncf %51 : vector<16x128xf32> to vector<16x128xbf16>
    %c0_22 = arith.constant 0 : index
    %c0_23 = arith.constant 0 : index
    %53 = vector.load %arg6[%c0_22, %c0_23] : memref<128x128xbf16, #tpu.memory_space<vmem>>, vector<128x128xbf16>
    %cst_24 = arith.constant dense<0.000000e+00> : vector<16x128xf32>
    %54 = tpu.matmul %52, %53, %cst_24 {dimension_numbers = #tpu.dot_dimension_numbers<[1], [0], [0], [1], [0, 0, 1, 1], [], []>} : vector<16x128xbf16>, vector<128x128xbf16>, vector<16x128xf32> -> vector<16x128xf32>
    %c0_25 = arith.constant 0 : index
    %c0_26 = arith.constant 0 : index
    %55 = vector.load %arg7[%c0_25, %c0_26] : memref<1x128xf32, #tpu.memory_space<vmem>>, vector<1x128xf32>
    %56 = vector.broadcast %55 : vector<1x128xf32> to vector<16x128xf32>
    %57 = arith.addf %54, %56 : vector<16x128xf32>
    %58 = arith.truncf %57 : vector<16x128xf32> to vector<16x128xbf16>
    %c0_27 = arith.constant 0 : index
    %c0_28 = arith.constant 0 : index
    %59 = vector.load %arg8[%c0_27, %c0_28] : memref<16x128xbf16, #tpu.memory_space<vmem>>, vector<16x128xbf16>
    tpu.vector_store %arg8[%c0_27, %c0_28], %58 {strides = array<i32>} : memref<16x128xbf16, #tpu.memory_space<vmem>>, vector<16x128xbf16>,
    return
  }
  func.func @transform_0(%arg0: i32) -> (i32, i32) {
    %c0_i32 = arith.constant 0 : i32
    %c0_i32_0 = arith.constant 0 : i32
    return %arg0, %c0_i32 : i32, i32
  }
  func.func @transform_1(%arg0: i32) -> (i32, i32) {
    %c0_i32 = arith.constant 0 : i32
    %c0_i32_0 = arith.constant 0 : i32
    %c0_i32_1 = arith.constant 0 : i32
    return %c0_i32, %c0_i32_0 : i32, i32
  }
  func.func @transform_2(%arg0: i32) -> (i32, i32) {
    %c0_i32 = arith.constant 0 : i32
    %c0_i32_0 = arith.constant 0 : i32
    %c0_i32_1 = arith.constant 0 : i32
    return %c0_i32, %c0_i32_0 : i32, i32
  }
  func.func @transform_3(%arg0: i32) -> (i32, i32) {
    %c0_i32 = arith.constant 0 : i32
    %c0_i32_0 = arith.constant 0 : i32
    %c0_i32_1 = arith.constant 0 : i32
    return %c0_i32, %c0_i32_0 : i32, i32
  }
  func.func @transform_4(%arg0: i32) -> (i32, i32) {
    %c0_i32 = arith.constant 0 : i32
    %c0_i32_0 = arith.constant 0 : i32
    %c0_i32_1 = arith.constant 0 : i32
    return %c0_i32, %c0_i32_0 : i32, i32
  }
  func.func @transform_5(%arg0: i32) -> (i32, i32) {
    %c0_i32 = arith.constant 0 : i32
    %c0_i32_0 = arith.constant 0 : i32
    %c0_i32_1 = arith.constant 0 : i32
    return %c0_i32, %c0_i32_0 : i32, i32
  }
  func.func @transform_6(%arg0: i32) -> (i32, i32) {
    %c0_i32 = arith.constant 0 : i32
    %c0_i32_0 = arith.constant 0 : i32
    %c0_i32_1 = arith.constant 0 : i32
    return %c0_i32, %c0_i32_0 : i32, i32
  }
  func.func @transform_7(%arg0: i32) -> (i32, i32) {
    %c0_i32 = arith.constant 0 : i32
    %c0_i32_0 = arith.constant 0 : i32
    return %arg0, %c0_i32 : i32, i32
  }
}

</mosaic_0001>

<llo_original>
// kernel: tpu_custom_call.1
$region0: #{tpu_custom_call.1}
  #allocation0 [shape = 'u32[]', space=smem, size = 0x4, offset = 0x4, fixed_abs, tag = 'smem constant byte address 0x4 - core index']
  #allocation1 [shape = 'u32[144,128]{1,0:T(1,128)}', space=vmem, size = 0x12000, scoped, tag = 'internal scratch']
  %s0 = inlined_call_operand.hbm [shape: bf16[16,256], index: 0, kind: input, shape index: {}]
  %s1 = inlined_call_operand.hbm [shape: bf16[256,128], index: 1, kind: input, shape index: {}]
  %s2 = inlined_call_operand.vmem [shape: f32[1,128], index: 2, kind: input, shape index: {}]
  %s3 = inlined_call_operand.hbm [shape: bf16[128,128], index: 3, kind: input, shape index: {}]
  %s4 = inlined_call_operand.vmem [shape: f32[1,128], index: 4, kind: input, shape index: {}]
  %s5 = inlined_call_operand.hbm [shape: bf16[128,128], index: 5, kind: input, shape index: {}]
  %s6 = inlined_call_operand.vmem [shape: f32[1,128], index: 6, kind: input, shape index: {}]
  %s7 = inlined_call_operand.hbm [shape: bf16[16,128], index: 7, kind: output, shape index: {}]
  %s8 = sld [smem:[#allocation0]]
  $region54: #{tpu_custom_call.1} parent=0
    _
  %s10 = ssub.s32 1, %s8
  %s11 = scalar_select 0, %s10, %s8
  $region1: #{tpu_custom_call.1} parent=0
    #allocation2 [shape = 'u8[8192]{0}', space=vmem, size = 0x2000, scoped, tag = 'input window, operand 0, single buffered']
    #allocation3 [shape = 's32[1]{0}', space=sflag, size = 0x4, scoped, tag = 'scoped memory for tpu_custom_call.1']
    #allocation4 [shape = 's32[1]{0}', space=sflag, size = 0x4, scoped, tag = 'scoped memory for tpu_custom_call.1']
    #allocation5 [shape = 'u8[65536]{0}', space=vmem, size = 0x10000, scoped, tag = 'input window, operand 1, single buffered']
    #allocation6 [shape = 's32[1]{0}', space=sflag, size = 0x4, scoped, tag = 'scoped memory for tpu_custom_call.1']
    #allocation7 [shape = 'u8[32768]{0}', space=vmem, size = 0x8000, scoped, tag = 'input window, operand 3, single buffered']
    #allocation8 [shape = 'u8[32768]{0}', space=vmem, size = 0x8000, scoped, tag = 'input window, operand 5, single buffered']
    #allocation9 [shape = 's32[1]{0}', space=sflag, size = 0x4, scoped, tag = 'scoped memory for tpu_custom_call.1']
    #allocation10 [shape = 'u8[4096]{0}', space=vmem, size = 0x1000, scoped, tag = 'output window, operand 0, single buffered']
    %12 = vsyncpa [#allocation3], 0
    %13 = vsyncpa [#allocation6], 0
    %14 = vsyncpa [#allocation9], 0
    %15 = vsyncpa [#allocation4], 0
    // Predicated region
    $region2: #{tpu_custom_call.1} parent=1 // pred_check
      _
    $region3: #{tpu_custom_call.1} parent=1 // pred_check_branch
      %17 = sbr.rel (0) target = $region5
    $region4: #{tpu_custom_call.1} parent=1 // pred_region
      %s19 = ssub.s32 256, 256
      %20 = vsyncadd [#allocation3], %s19
      %s21 = sshll.u32 [#allocation2], 4
      %s22 = int_to_ptr.vmem [resolvable:$true] %s21
      %27 = dma.hbm_to_vmem [thread:$0]  %s0, 256, %s22, [#allocation3], 128, 128, 8
    $region5: #{tpu_custom_call.1} parent=1 // pred_fallthru
      _
    // Predicated region
    $region6: #{tpu_custom_call.1} parent=1 // pred_check
      _
    $region7: #{tpu_custom_call.1} parent=1 // pred_check_branch
      %29 = sbr.rel (0) target = $region9
    $region8: #{tpu_custom_call.1} parent=1 // pred_region
      %s31 = ssub.s32 2048, 2048
      %32 = vsyncadd [#allocation6], %s31
      %s33 = sshll.u32 [#allocation5], 4
      %s34 = int_to_ptr.vmem [resolvable:$true] %s33
      %39 = dma.hbm_to_vmem [thread:$0]  %s1, 2048, %s34, [#allocation6], 64, 64, 4
    $region9: #{tpu_custom_call.1} parent=1 // pred_fallthru
      _
    // Predicated region
    $region10: #{tpu_custom_call.1} parent=1 // pred_check
      _
    $region11: #{tpu_custom_call.1} parent=1 // pred_check_branch
      %41 = sbr.rel (0) target = $region13
    $region12: #{tpu_custom_call.1} parent=1 // pred_region
      _
    $region13: #{tpu_custom_call.1} parent=1 // pred_fallthru
      _
    // Predicated region
    $region14: #{tpu_custom_call.1} parent=1 // pred_check
      _
    $region15: #{tpu_custom_call.1} parent=1 // pred_check_branch
      %43 = sbr.rel (0) target = $region17
    $region16: #{tpu_custom_call.1} parent=1 // pred_region
      %s45 = ssub.s32 1024, 1024
      %46 = vsyncadd [#allocation6], %s45
      %s47 = sshll.u32 [#allocation7], 4
      %s48 = int_to_ptr.vmem [resolvable:$true] %s47
      %53 = dma.hbm_to_vmem [thread:$0]  %s3, 1024, %s48, [#allocation6], 64, 64, 4
    $region17: #{tpu_custom_call.1} parent=1 // pred_fallthru
      _
    // Predicated region
    $region18: #{tpu_custom_call.1} parent=1 // pred_check
      _
    $region19: #{tpu_custom_call.1} parent=1 // pred_check_branch
      %55 = sbr.rel (0) target = $region21
    $region20: #{tpu_custom_call.1} parent=1 // pred_region
      _
    $region21: #{tpu_custom_call.1} parent=1 // pred_fallthru
      _
    // Predicated region
    $region22: #{tpu_custom_call.1} parent=1 // pred_check
      _
    $region23: #{tpu_custom_call.1} parent=1 // pred_check_branch
      %57 = sbr.rel (0) target = $region25
    $region24: #{tpu_custom_call.1} parent=1 // pred_region
      %s59 = ssub.s32 1024, 1024
      %60 = vsyncadd [#allocation9], %s59
      %s61 = sshll.u32 [#allocation8], 4
      %s62 = int_to_ptr.vmem [resolvable:$true] %s61
      %67 = dma.hbm_to_vmem [thread:$0]  %s5, 1024, %s62, [#allocation9], 64, 64, 4
    $region25: #{tpu_custom_call.1} parent=1 // pred_fallthru
      _
    // Predicated region
    $region26: #{tpu_custom_call.1} parent=1 // pred_check
      _
    $region27: #{tpu_custom_call.1} parent=1 // pred_check_branch
      %69 = sbr.rel (0) target = $region29
    $region28: #{tpu_custom_call.1} parent=1 // pred_region
      _
    $region29: #{tpu_custom_call.1} parent=1 // pred_fallthru
      _
    // Predicated region
    $region30: #{tpu_custom_call.1} parent=1 // pred_check
      _
    $region31: #{tpu_custom_call.1} parent=1 // pred_check_branch
      %71 = sbr.rel (0) target = $region33
    $region32: #{tpu_custom_call.1} parent=1 // pred_region
      %72 = dma.done [#allocation3], 256
    $region33: #{tpu_custom_call.1} parent=1 // pred_fallthru
      _
    // Predicated region
    $region34: #{tpu_custom_call.1} parent=1 // pred_check
      _
    $region35: #{tpu_custom_call.1} parent=1 // pred_check_branch
      %74 = sbr.rel (0) target = $region37
    $region36: #{tpu_custom_call.1} parent=1 // pred_region
      %75 = dma.done [#allocation6], 2048
    $region37: #{tpu_custom_call.1} parent=1 // pred_fallthru
      _
    // Predicated region
    $region38: #{tpu_custom_call.1} parent=1 // pred_check
      _
    $region39: #{tpu_custom_call.1} parent=1 // pred_check_branch
      %77 = sbr.rel (0) target = $region41
    $region40: #{tpu_custom_call.1} parent=1 // pred_region
      %78 = dma.done [#allocation6], 1024
    $region41: #{tpu_custom_call.1} parent=1 // pred_fallthru
      _
    // Predicated region
    $region42: #{tpu_custom_call.1} parent=1 // pred_check
      _
    $region43: #{tpu_custom_call.1} parent=1 // pred_check_branch
      %80 = sbr.rel (0) target = $region45
    $region44: #{tpu_custom_call.1} parent=1 // pred_region
      %81 = dma.done [#allocation9], 1024
    $region45: #{tpu_custom_call.1} parent=1 // pred_fallthru
      _
    %v83 = vld [vmem:[#allocation2] sm:$0xff]
    %v84 = vld [vmem:[#allocation2 + $0x8] sm:$0xff]
    %v85 = vld [vmem:[#allocation5] sm:$0xf]
    %v86 = vld [vmem:[#allocation5 + $0x4] sm:$0xf]
    %v87 = vld [vmem:[#allocation5 + $0x8] sm:$0xf]
    %v88 = vld [vmem:[#allocation5 + $0xc] sm:$0xf]
    %v89 = vld [vmem:[#allocation5 + $0x10] sm:$0xf]
    %v90 = vld [vmem:[#allocation5 + $0x14] sm:$0xf]
    %v91 = vld [vmem:[#allocation5 + $0x18] sm:$0xf]
    %v92 = vld [vmem:[#allocation5 + $0x1c] sm:$0xf]
    %v93 = vld [vmem:[#allocation5 + $0x20] sm:$0xf]
    %v94 = vld [vmem:[#allocation5 + $0x24] sm:$0xf]
    %v95 = vld [vmem:[#allocation5 + $0x28] sm:$0xf]
    %v96 = vld [vmem:[#allocation5 + $0x2c] sm:$0xf]
    %v97 = vld [vmem:[#allocation5 + $0x30] sm:$0xf]
    %v98 = vld [vmem:[#allocation5 + $0x34] sm:$0xf]
    %v99 = vld [vmem:[#allocation5 + $0x38] sm:$0xf]
    %v100 = vld [vmem:[#allocation5 + $0x3c] sm:$0xf]
    %v101 = vld [vmem:[#allocation5 + $0x40] sm:$0xf]
    %v102 = vld [vmem:[#allocation5 + $0x44] sm:$0xf]
    %v103 = vld [vmem:[#allocation5 + $0x48] sm:$0xf]
    %v104 = vld [vmem:[#allocation5 + $0x4c] sm:$0xf]
    %v105 = vld [vmem:[#allocation5 + $0x50] sm:$0xf]
    %v106 = vld [vmem:[#allocation5 + $0x54] sm:$0xf]
    %v107 = vld [vmem:[#allocation5 + $0x58] sm:$0xf]
    %v108 = vld [vmem:[#allocation5 + $0x5c] sm:$0xf]
    %v109 = vld [vmem:[#allocation5 + $0x60] sm:$0xf]
    %v110 = vld [vmem:[#allocation5 + $0x64] sm:$0xf]
    %v111 = vld [vmem:[#allocation5 + $0x68] sm:$0xf]
    %v112 = vld [vmem:[#allocation5 + $0x6c] sm:$0xf]
    %v113 = vld [vmem:[#allocation5 + $0x70] sm:$0xf]
    %v114 = vld [vmem:[#allocation5 + $0x74] sm:$0xf]
    %v115 = vld [vmem:[#allocation5 + $0x78] sm:$0xf]
    %v116 = vld [vmem:[#allocation5 + $0x7c] sm:$0xf]
    %v117 = vld [vmem:[%s2] sm:$0x1]
    %v119 = vlaneseq
    %v120 = vshrl.u32 %v119, 7
    %v121 = vsub.s32 0, %v120
    %v122 = vrot.slane %v117, %v121
    %v126 = vunpack.c.l.b16 %v83
    %v127 = vunpack.c.h.b16 %v83
    %v128 = vunpack.c.l.b16 %v84
    %v129 = vunpack.c.h.b16 %v84
    %v130 = vpack.c.b16 %v128, %v126
    %v131 = vpack.c.b16 %v129, %v127
    %v166 = vunpack.c.l.b16 %v85
    %v167 = vunpack.c.l.b16 %v86
    %v168 = vunpack.c.l.b16 %v87
    %v169 = vunpack.c.l.b16 %v88
    %v170 = vunpack.c.l.b16 %v89
    %v171 = vunpack.c.l.b16 %v90
    %v172 = vunpack.c.l.b16 %v91
    %v173 = vunpack.c.l.b16 %v92
    %v174 = vunpack.c.l.b16 %v93
    %v175 = vunpack.c.l.b16 %v94
    %v176 = vunpack.c.l.b16 %v95
    %v177 = vunpack.c.l.b16 %v96
    %v178 = vunpack.c.l.b16 %v97
    %v179 = vunpack.c.l.b16 %v98
    %v180 = vunpack.c.l.b16 %v99
    %v181 = vunpack.c.l.b16 %v100
    %v182 = vunpack.c.l.b16 %v101
    %v183 = vunpack.c.l.b16 %v102
    %v184 = vunpack.c.l.b16 %v103
    %v185 = vunpack.c.l.b16 %v104
    %v186 = vunpack.c.l.b16 %v105
    %v187 = vunpack.c.l.b16 %v106
    %v188 = vunpack.c.l.b16 %v107
    %v189 = vunpack.c.l.b16 %v108
    %v190 = vunpack.c.l.b16 %v109
    %v191 = vunpack.c.l.b16 %v110
    %v192 = vunpack.c.l.b16 %v111
    %v193 = vunpack.c.l.b16 %v112
    %v194 = vunpack.c.l.b16 %v113
    %v195 = vunpack.c.l.b16 %v114
    %v196 = vunpack.c.l.b16 %v115
    %v197 = vunpack.c.l.b16 %v116
    %v198 = vpack.c.b16 %v167, %v166
    %v199 = vpack.c.b16 %v169, %v168
    %v200 = vpack.c.b16 %v171, %v170
    %v201 = vpack.c.b16 %v173, %v172
    %v202 = vpack.c.b16 %v175, %v174
    %v203 = vpack.c.b16 %v177, %v176
    %v204 = vpack.c.b16 %v179, %v178
    %v205 = vpack.c.b16 %v181, %v180
    %v206 = vpack.c.b16 %v183, %v182
    %v207 = vpack.c.b16 %v185, %v184
    %v208 = vpack.c.b16 %v187, %v186
    %v209 = vpack.c.b16 %v189, %v188
    %v210 = vpack.c.b16 %v191, %v190
    %v211 = vpack.c.b16 %v193, %v192
    %v212 = vpack.c.b16 %v195, %v194
    %v213 = vpack.c.b16 %v197, %v196
    %230 = vmatprep.subr.bf16.mxu0 0
    %231 = vmatpush1.bf16.msra.mxu0 %v205
    %232 = vmatprep.subr.bf16.mxu0 0
    %233 = vmatpush1.bf16.msra.mxu0 %v204
    %234 = vmatprep.subr.bf16.mxu0 0
    %235 = vmatpush1.bf16.msra.mxu0 %v203
    %236 = vmatprep.subr.bf16.mxu0 0
    %237 = vmatpush1.bf16.msra.mxu0 %v202
    %238 = vmatprep.subr.bf16.mxu0 0
    %239 = vmatpush1.bf16.msra.mxu0 %v201
    %240 = vmatprep.subr.bf16.mxu0 0
    %241 = vmatpush1.bf16.msra.mxu0 %v200
    %242 = vmatprep.subr.bf16.mxu0 0
    %243 = vmatpush1.bf16.msra.mxu0 %v199
    %244 = vmatprep.subr.bf16.mxu0 0
    %245 = vmatpush1.bf16.msra.mxu0 %v198
    %246 = vmatprep.subr.bf16.mxu0 0
    %247 = vmatpush2.bf16.msra.mxu0 %v213
    %248 = vmatprep.subr.bf16.mxu0 0
    %249 = vmatpush2.bf16.msra.mxu0 %v212
    %250 = vmatprep.subr.bf16.mxu0 0
    %251 = vmatpush2.bf16.msra.mxu0 %v211
    %252 = vmatprep.subr.bf16.mxu0 0
    %253 = vmatpush2.bf16.msra.mxu0 %v210
    %254 = vmatprep.subr.bf16.mxu0 0
    %255 = vmatpush2.bf16.msra.mxu0 %v209
    %256 = vmatprep.subr.bf16.mxu0 0
    %257 = vmatpush2.bf16.msra.mxu0 %v208
    %258 = vmatprep.subr.bf16.mxu0 0
    %259 = vmatpush2.bf16.msra.mxu0 %v207
    %260 = vmatprep.subr.bf16.mxu0 0
    %261 = vmatpush2.bf16.msra.mxu0 %v206
    %262 = vmatprep.mubr.bf16.mxu0 %v131
    %263 = vmatmul.mubr.bf16.gmra.mxu0 %v130
    %v264 = vpop.f32.mrf.mxu0
    %v265 = vadd.f32 %v122, %v264
    %v266 = vpop.f32.mrf.mxu0
    %v267 = vpop.f32.mrf.mxu0
    %v268 = vadd.f32 %v122, %v267
    %v269 = vpop.f32.mrf.mxu0
    %270 = vdwg.mxu0
    %271 = vadd.xlane.f32.xlu0 %v265
    %v272 = vpop.xlane.xlu0 %271
    %273 = vadd.xlane.f32.xlu0 %v268
    %v274 = vpop.xlane.xlu0 %273
    %v275 = vmul.f32 %v272, 0.03125
    %v276 = vmul.f32 %v274, 0.03125
    %v277 = vmul.f32 %v265, %v265
    %v278 = vmul.f32 %v268, %v268
    %279 = vadd.xlane.f32.xlu0 %v277
    %v280 = vpop.xlane.xlu0 %279
    %281 = vadd.xlane.f32.xlu0 %v278
    %v282 = vpop.xlane.xlu0 %281
    %v283 = vmul.f32 %v280, 0.03125
    %v284 = vmul.f32 %v282, 0.03125
    %v285 = vmul.f32 %v275, %v275
    %v286 = vmul.f32 %v276, %v276
    %v287 = vsub.f32 %v283, %v285
    %v288 = vsub.f32 %v284, %v286
    %v289 = vsub.f32 %v265, %v275
    %v290 = vsub.f32 %v268, %v276
    %v291 = vadd.f32 %v287, 1e-05
    %v292 = vadd.f32 %v288, 1e-05
    %v293 = vrsqrt.pop %v291
    %v294 = vrsqrt.pop %v292
    %v295 = vmul.f32 %v289, %v293
    %v296 = vmul.f32 %v290, %v294
    %v297 = vmax.f32 %v295, 0.0
    %v298 = vmax.f32 %v296, 0.0
    %v299 = vpack.c.bf16 %v298, %v297
    %v300 = vld [vmem:[#allocation7] sm:$0xf]
    %v301 = vld [vmem:[#allocation7 + $0x4] sm:$0xf]
    %v302 = vld [vmem:[#allocation7 + $0x8] sm:$0xf]
    %v303 = vld [vmem:[#allocation7 + $0xc] sm:$0xf]
    %v304 = vld [vmem:[#allocation7 + $0x10] sm:$0xf]
    %v305 = vld [vmem:[#allocation7 + $0x14] sm:$0xf]
    %v306 = vld [vmem:[#allocation7 + $0x18] sm:$0xf]
    %v307 = vld [vmem:[#allocation7 + $0x1c] sm:$0xf]
    %v308 = vld [vmem:[#allocation7 + $0x20] sm:$0xf]
    %v309 = vld [vmem:[#allocation7 + $0x24] sm:$0xf]
    %v310 = vld [vmem:[#allocation7 + $0x28] sm:$0xf]
    %v311 = vld [vmem:[#allocation7 + $0x2c] sm:$0xf]
    %v312 = vld [vmem:[#allocation7 + $0x30] sm:$0xf]
    %v313 = vld [vmem:[#allocation7 + $0x34] sm:$0xf]
    %v314 = vld [vmem:[#allocation7 + $0x38] sm:$0xf]
    %v315 = vld [vmem:[#allocation7 + $0x3c] sm:$0xf]
    %v316 = vld [vmem:[%s4] sm:$0x1]
    %v318 = vlaneseq
    %v319 = vshrl.u32 %v318, 7
    %v320 = vsub.s32 0, %v319
    %v321 = vrot.slane %v316, %v320
    %v339 = vunpack.c.l.b16 %v300
    %v340 = vunpack.c.l.b16 %v301
    %v341 = vunpack.c.l.b16 %v302
    %v342 = vunpack.c.l.b16 %v303
    %v343 = vunpack.c.l.b16 %v304
    %v344 = vunpack.c.l.b16 %v305
    %v345 = vunpack.c.l.b16 %v306
    %v346 = vunpack.c.l.b16 %v307
    %v347 = vunpack.c.l.b16 %v308
    %v348 = vunpack.c.l.b16 %v309
    %v349 = vunpack.c.l.b16 %v310
    %v350 = vunpack.c.l.b16 %v311
    %v351 = vunpack.c.l.b16 %v312
    %v352 = vunpack.c.l.b16 %v313
    %v353 = vunpack.c.l.b16 %v314
    %v354 = vunpack.c.l.b16 %v315
    %v355 = vpack.c.b16 %v340, %v339
    %v356 = vpack.c.b16 %v342, %v341
    %v357 = vpack.c.b16 %v344, %v343
    %v358 = vpack.c.b16 %v346, %v345
    %v359 = vpack.c.b16 %v348, %v347
    %v360 = vpack.c.b16 %v350, %v349
    %v361 = vpack.c.b16 %v352, %v351
    %v362 = vpack.c.b16 %v354, %v353
    %371 = vmatprep.subr.bf16.mxu0 0
    %372 = vmatpush1.bf16.msra.mxu0 %v362
    %373 = vmatprep.subr.bf16.mxu0 0
    %374 = vmatpush1.bf16.msra.mxu0 %v361
    %375 = vmatprep.subr.bf16.mxu0 0
    %376 = vmatpush1.bf16.msra.mxu0 %v360
    %377 = vmatprep.subr.bf16.mxu0 0
    %378 = vmatpush1.bf16.msra.mxu0 %v359
    %379 = vmatprep.subr.bf16.mxu0 0
    %380 = vmatpush1.bf16.msra.mxu0 %v358
    %381 = vmatprep.subr.bf16.mxu0 0
    %382 = vmatpush1.bf16.msra.mxu0 %v357
    %383 = vmatprep.subr.bf16.mxu0 0
    %384 = vmatpush1.bf16.msra.mxu0 %v356
    %385 = vmatprep.subr.bf16.mxu0 0
    %386 = vmatpush1.bf16.msra.mxu0 %v355
    %387 = vmatprep.subr.bf16.mxu0 0
    %388 = vmatpush2.bf16.msra.mxu0 0
    %389 = vmatprep.subr.bf16.mxu0 0
    %390 = vmatpush2.bf16.msra.mxu0 0
    %391 = vmatprep.subr.bf16.mxu0 0
    %392 = vmatpush2.bf16.msra.mxu0 0
    %393 = vmatprep.subr.bf16.mxu0 0
    %394 = vmatpush2.bf16.msra.mxu0 0
    %395 = vmatprep.subr.bf16.mxu0 0
    %396 = vmatpush2.bf16.msra.mxu0 0
    %397 = vmatprep.subr.bf16.mxu0 0
    %398 = vmatpush2.bf16.msra.mxu0 0
    %399 = vmatprep.subr.bf16.mxu0 0
    %400 = vmatpush2.bf16.msra.mxu0 0
    %401 = vmatprep.subr.bf16.mxu0 0
    %402 = vmatpush2.bf16.msra.mxu0 0
    %403 = vmatprep.mubr.bf16.mxu0 0
    %404 = vmatmul.mubr.bf16.gmra.mxu0 %v299
    %v405 = vpop.f32.mrf.mxu0
    %v406 = vadd.f32 %v321, %v405
    %v407 = vpop.f32.mrf.mxu0
    %v408 = vpop.f32.mrf.mxu0
    %v409 = vadd.f32 %v321, %v408
    %v410 = vpop.f32.mrf.mxu0
    %411 = vdwg.mxu0
    %412 = vadd.xlane.f32.xlu0 %v406
    %v413 = vpop.xlane.xlu0 %412
    %414 = vadd.xlane.f32.xlu0 %v409
    %v415 = vpop.xlane.xlu0 %414
    %v416 = vmul.f32 %v413, 0.03125
    %v417 = vmul.f32 %v415, 0.03125
    %v418 = vmul.f32 %v406, %v406
    %v419 = vmul.f32 %v409, %v409
    %420 = vadd.xlane.f32.xlu0 %v418
    %v421 = vpop.xlane.xlu0 %420
    %422 = vadd.xlane.f32.xlu0 %v419
    %v423 = vpop.xlane.xlu0 %422
    %v424 = vmul.f32 %v421, 0.03125
    %v425 = vmul.f32 %v423, 0.03125
    %v426 = vmul.f32 %v416, %v416
    %v427 = vmul.f32 %v417, %v417
    %v428 = vsub.f32 %v424, %v426
    %v429 = vsub.f32 %v425, %v427
    %v430 = vsub.f32 %v406, %v416
    %v431 = vsub.f32 %v409, %v417
    %v432 = vadd.f32 %v428, 1e-05
    %v433 = vadd.f32 %v429, 1e-05
    %v434 = vrsqrt.pop %v432
    %v435 = vrsqrt.pop %v433
    %v436 = vmul.f32 %v430, %v434
    %v437 = vmul.f32 %v431, %v435
    %v438 = vmax.f32 %v436, 0.0
    %v439 = vmax.f32 %v437, 0.0
    %v440 = vpack.c.bf16 %v439, %v438
    %v441 = vld [vmem:[#allocation8] sm:$0xf]
    %v442 = vld [vmem:[#allocation8 + $0x4] sm:$0xf]
    %v443 = vld [vmem:[#allocation8 + $0x8] sm:$0xf]
    %v444 = vld [vmem:[#allocation8 + $0xc] sm:$0xf]
    %v445 = vld [vmem:[#allocation8 + $0x10] sm:$0xf]
    %v446 = vld [vmem:[#allocation8 + $0x14] sm:$0xf]
    %v447 = vld [vmem:[#allocation8 + $0x18] sm:$0xf]
    %v448 = vld [vmem:[#allocation8 + $0x1c] sm:$0xf]
    %v449 = vld [vmem:[#allocation8 + $0x20] sm:$0xf]
    %v450 = vld [vmem:[#allocation8 + $0x24] sm:$0xf]
    %v451 = vld [vmem:[#allocation8 + $0x28] sm:$0xf]
    %v452 = vld [vmem:[#allocation8 + $0x2c] sm:$0xf]
    %v453 = vld [vmem:[#allocation8 + $0x30] sm:$0xf]
    %v454 = vld [vmem:[#allocation8 + $0x34] sm:$0xf]
    %v455 = vld [vmem:[#allocation8 + $0x38] sm:$0xf]
    %v456 = vld [vmem:[#allocation8 + $0x3c] sm:$0xf]
    %v457 = vld [vmem:[%s6] sm:$0x1]
    %v459 = vlaneseq
    %v460 = vshrl.u32 %v459, 7
    %v461 = vsub.s32 0, %v460
    %v462 = vrot.slane %v457, %v461
    %v480 = vunpack.c.l.b16 %v441
    %v481 = vunpack.c.l.b16 %v442
    %v482 = vunpack.c.l.b16 %v443
    %v483 = vunpack.c.l.b16 %v444
    %v484 = vunpack.c.l.b16 %v445
    %v485 = vunpack.c.l.b16 %v446
    %v486 = vunpack.c.l.b16 %v447
    %v487 = vunpack.c.l.b16 %v448
    %v488 = vunpack.c.l.b16 %v449
    %v489 = vunpack.c.l.b16 %v450
    %v490 = vunpack.c.l.b16 %v451
    %v491 = vunpack.c.l.b16 %v452
    %v492 = vunpack.c.l.b16 %v453
    %v493 = vunpack.c.l.b16 %v454
    %v494 = vunpack.c.l.b16 %v455
    %v495 = vunpack.c.l.b16 %v456
    %v496 = vpack.c.b16 %v481, %v480
    %v497 = vpack.c.b16 %v483, %v482
    %v498 = vpack.c.b16 %v485, %v484
    %v499 = vpack.c.b16 %v487, %v486
    %v500 = vpack.c.b16 %v489, %v488
    %v501 = vpack.c.b16 %v491, %v490
    %v502 = vpack.c.b16 %v493, %v492
    %v503 = vpack.c.b16 %v495, %v494
    %512 = vmatprep.subr.bf16.mxu0 0
    %513 = vmatpush1.bf16.msra.mxu0 %v503
    %514 = vmatprep.subr.bf16.mxu0 0
    %515 = vmatpush1.bf16.msra.mxu0 %v502
    %516 = vmatprep.subr.bf16.mxu0 0
    %517 = vmatpush1.bf16.msra.mxu0 %v501
    %518 = vmatprep.subr.bf16.mxu0 0
    %519 = vmatpush1.bf16.msra.mxu0 %v500
    %520 = vmatprep.subr.bf16.mxu0 0
    %521 = vmatpush1.bf16.msra.mxu0 %v499
    %522 = vmatprep.subr.bf16.mxu0 0
    %523 = vmatpush1.bf16.msra.mxu0 %v498
    %524 = vmatprep.subr.bf16.mxu0 0
    %525 = vmatpush1.bf16.msra.mxu0 %v497
    %526 = vmatprep.subr.bf16.mxu0 0
    %527 = vmatpush1.bf16.msra.mxu0 %v496
    %528 = vmatprep.subr.bf16.mxu0 0
    %529 = vmatpush2.bf16.msra.mxu0 0
    %530 = vmatprep.subr.bf16.mxu0 0
    %531 = vmatpush2.bf16.msra.mxu0 0
    %532 = vmatprep.subr.bf16.mxu0 0
    %533 = vmatpush2.bf16.msra.mxu0 0
    %534 = vmatprep.subr.bf16.mxu0 0
    %535 = vmatpush2.bf16.msra.mxu0 0
    %536 = vmatprep.subr.bf16.mxu0 0
    %537 = vmatpush2.bf16.msra.mxu0 0
    %538 = vmatprep.subr.bf16.mxu0 0
    %539 = vmatpush2.bf16.msra.mxu0 0
    %540 = vmatprep.subr.bf16.mxu0 0
    %541 = vmatpush2.bf16.msra.mxu0 0
    %542 = vmatprep.subr.bf16.mxu0 0
    %543 = vmatpush2.bf16.msra.mxu0 0
    %544 = vmatprep.mubr.bf16.mxu0 0
    %545 = vmatmul.mubr.bf16.gmra.mxu0 %v440
    %v546 = vpop.f32.mrf.mxu0
    %v547 = vadd.f32 %v462, %v546
    %v548 = vpop.f32.mrf.mxu0
    %v549 = vpop.f32.mrf.mxu0
    %v550 = vadd.f32 %v462, %v549
    %v551 = vpop.f32.mrf.mxu0
    %552 = vdwg.mxu0
    %v553 = vpack.c.bf16 %v550, %v547
    %v555 = vunpack.c.l.b16 %v553
    %v556 = vunpack.c.h.b16 %v553
    %v557 = vpack.c.b16 %v555, %v555
    %v558 = vpack.c.b16 %v556, %v556
    %561 = vst [vmem:[#allocation10] sm:$0xf] %v557
    %562 = vst [vmem:[#allocation10 + $0x4] sm:$0xf] %v558
    // Predicated region
    $region46: #{tpu_custom_call.1} parent=1 // pred_check
      _
    $region47: #{tpu_custom_call.1} parent=1 // pred_check_branch
      %564 = sbr.rel (0) target = $region49
    $region48: #{tpu_custom_call.1} parent=1 // pred_region
      %s566 = ssub.s32 128, 128
      %567 = vsyncadd [#allocation4], %s566
      %s568 = sshll.u32 [#allocation10], 4
      %s569 = int_to_ptr.vmem [resolvable:$true] %s568
      %574 = dma.vmem_to_hbm [thread:$0]  %s569, 128, %s7, [#allocation4], 64, 64, 4
    $region49: #{tpu_custom_call.1} parent=1 // pred_fallthru
      _
    // Predicated region
    $region50: #{tpu_custom_call.1} parent=1 // pred_check
      _
    $region51: #{tpu_custom_call.1} parent=1 // pred_check_branch
      %576 = sbr.rel (0) target = $region53
    $region52: #{tpu_custom_call.1} parent=1 // pred_region
      %577 = dma.done [#allocation4], 128
    $region53: #{tpu_custom_call.1} parent=1 // pred_fallthru
      _
    %578 = vsyncpa [#allocation3], 1
    %579 = vsyncpa [#allocation6], 1
    %580 = vsyncpa [#allocation9], 1
    %581 = vsyncpa [#allocation4], 1

</llo_original>
